<compile_context>
chip_gen: v6e
topology: v6e:2x2x1
jax: 0.10.0
libtpu: 0.0.40
codegen_flags: <defaults>
</compile_context>

<pallas_src>
import functools

import jax
import jax.numpy as jnp
import numpy as np
from jax import lax
from jax.experimental import pallas as pl
from jax.experimental.pallas import tpu as pltpu

LN_EPS = 1e-5  # PyTorch nn.LayerNorm default


def _round_up(n, m):
    return ((n + m - 1) // m) * m


def metric_predictor_kernel(x_ref, gamma_ref, beta_ref, w1_ref, b1_ref,
                            w2_ref, b2_ref, o_ref, *, matmul_dtype):
    # x tile (TB, D); x is f32 in HBM and all elementwise math stays f32
    # (v5e has no bf16 VPU/EUP, and LN statistics must not be quantized).
    x = x_ref[...].astype(jnp.float32)

    # --- LayerNorm over the full (unpadded) feature dim -> no masking needed ---
    mean = jnp.mean(x, axis=-1, keepdims=True)
    centered = x - mean
    var = jnp.mean(centered * centered, axis=-1, keepdims=True)
    xn = centered * lax.rsqrt(var + LN_EPS)
    xn = xn * gamma_ref[...].astype(jnp.float32) + beta_ref[...].astype(jnp.float32)

    # --- dense1 on the MXU (bf16 feed by default, f32 accumulate) + bias + ReLU ---
    h = jnp.dot(xn.astype(matmul_dtype), w1_ref[...],
                preferred_element_type=jnp.float32)
    h = jnp.maximum(h + b1_ref[...].astype(jnp.float32), 0.0)

    # TODO(synk): nn.Dropout(0.1) is identity in eval/inference mode; training-mode
    # stochastic dropout (pltpu.prng_seed + prng_random_bits) intentionally omitted.

    # --- dense2 (out dim 1) as w2 (1,H) . h^T -> lane-dense (1, TB) logit row ---
    logit = lax.dot_general(w2_ref[...].astype(jnp.float32), h,
                            dimension_numbers=(((1,), (1,)), ((), ())),
                            preferred_element_type=jnp.float32)      # (1, TB)
    logit = logit + b2_ref[0, 0]                                      # scalar bias (SMEM)
    o_ref[...] = pl.reciprocal(1.0 + jnp.exp(-logit), approx=True)    # EUP exp + rcp


def prepare_params(gamma, beta, w1, b1, w2, b2, *, matmul_dtype=jnp.bfloat16):
    """One-time (model-load) parameter prep, hoisted out of the per-call hot path.

    w1 is dense1.weight.T with shape (D, H); w2 is dense2.weight with shape (1, H).
    The MXU feed dtype defaults to bf16 on every TPU generation (incl. v5e, whose
    MXU is natively bf16); LayerNorm / ReLU / sigmoid remain f32 inside the kernel.
    """
    f32 = jnp.float32
    return {
        "gamma": jnp.asarray(gamma, f32).reshape(1, -1),
        "beta": jnp.asarray(beta, f32).reshape(1, -1),
        "w1": jnp.asarray(w1, matmul_dtype),
        "b1": jnp.asarray(b1, f32).reshape(1, -1),
        "w2": jnp.asarray(w2, f32).reshape(1, -1),
        "b2": jnp.asarray(b2, f32).reshape(1, 1),
        "matmul_dtype": matmul_dtype,
    }


def _choose_batch_tile(B, block_b):
    block_b = max(128, _round_up(block_b, 128))
    if B >= 256:
        # >= 2 grid steps so both v7x TensorCores get work under
        # dimension_semantics=("parallel",); multiple of 128 keeps every
        # (1, TB) output block lane-aligned.
        return min(block_b, _round_up(-(-B // 2), 128))
    return _round_up(max(B, 1), 8)   # single-step grid covers the whole batch


def _vmem_limit_bytes(TB, D, H, x_itemsize, w_itemsize):
    needed = (2 * TB * D * x_itemsize          # x tile, double-buffered
              + D * H * w_itemsize             # w1, resident (single-buffered)
              + 4 * (2 * D + 2 * H + TB) * 4   # small params + output blocks
              + 2 * TB * max(D, H) * 4)        # f32 intermediates (xn, h)
    try:
        phys = pltpu.get_tpu_info().vmem_capacity_bytes
    except Exception:
        phys = 64 * 1024 * 1024                # v7x per-core physical VMEM (lower bound)
    cap = (phys * 7) // 8                      # headroom for compiler internal scratch
    return int(min(cap, max(32 * 1024 * 1024, needed + (8 << 20))))


def metric_predictor(x, params, *, block_b=512):
    """x: (B, D). Returns sigmoid(dense2(relu(dense1(LN(x))))) with shape (B,)."""
    B, D = x.shape
    H = params["w1"].shape[1]
    assert params["w1"].shape[0] == D

    TB = _choose_batch_tile(B, block_b)
    G = pl.cdiv(B, TB)
    vmem_limit = _vmem_limit_bytes(TB, D, H, x.dtype.itemsize,
                                   jnp.dtype(params["matmul_dtype"]).itemsize)

    kernel = functools.partial(metric_predictor_kernel,
                               matmul_dtype=params["matmul_dtype"])

    def run(single_buffer_weights):
        wkw = {"pipeline_mode": pl.Buffered(1)} if single_buffer_weights else {}
        return pl.pallas_call(
            kernel,
            out_shape=jax.ShapeDtypeStruct((1, G * TB), jnp.float32),
            grid=(G,),
            in_specs=[
                # x: batch-tiled & pipelined straight from HBM (no padded copy);
                # the ragged last tile is handled by the grid (OOB rows are per-row
                # independent and never land in the first B output columns).
                pl.BlockSpec((TB, D), lambda i: (i, 0)),
                pl.BlockSpec((1, D), lambda i: (0, 0), **wkw),      # gamma (resident)
                pl.BlockSpec((1, D), lambda i: (0, 0), **wkw),      # beta
                pl.BlockSpec((D, H), lambda i: (0, 0), **wkw),      # w1 (resident)
                pl.BlockSpec((1, H), lambda i: (0, 0), **wkw),      # b1
                pl.BlockSpec((1, H), lambda i: (0, 0), **wkw),      # w2 row
                pl.BlockSpec(memory_space=pltpu.MemorySpace.SMEM),  # b2 scalar (SMEM)
            ],
            out_specs=pl.BlockSpec((1, TB), lambda i: (0, i)),      # lane-dense rows
            compiler_params=pltpu.CompilerParams(
                dimension_semantics=("parallel",),   # batch tiles independent (2 TCs on v7x)
                vmem_limit_bytes=vmem_limit,
            ),
        )(x, params["gamma"], params["beta"], params["w1"],
          params["b1"], params["w2"], params["b2"])

    # TODO(synk): for very large D*H (w1 tile near the VMEM cap) add a K-reduction
    # grid axis ("arbitrary") with an f32 accumulator scratch instead of one
    # resident w1 block.
    try:
        out = run(True)      # single-buffer the constant-index weight specs (v7x VMEM)
    except Exception:
        out = run(False)     # jax build rejects pipeline_mode -> default double buffering
    return out[0, :B]        # drop batch padding, squeeze(-1)


def _ref_forward(x, raw):
    gamma, beta, w1, b1, w2, b2 = raw
    mean = jnp.mean(x, axis=-1, keepdims=True)
    var = jnp.mean((x - mean) ** 2, axis=-1, keepdims=True)
    xn = (x - mean) / jnp.sqrt(var + LN_EPS) * gamma.reshape(-1) + beta.reshape(-1)
    h = jnp.maximum(xn @ w1 + b1.reshape(-1), 0.0)
    logit = h @ w2.reshape(-1) + jnp.reshape(b2, ())
    return jax.nn.sigmoid(logit)


if __name__ == "__main__":
    def make_inputs(key, B, D, H):
        kx, kw1, kb1, kw2, kb2 = jax.random.split(key, 5)
        x = jax.random.normal(kx, (B, D), dtype=jnp.float32)
        gamma = jnp.ones((D,), jnp.float32)
        beta = jnp.zeros((D,), jnp.float32)
        lim1 = 1.0 / np.sqrt(D)
        w1 = jax.random.uniform(kw1, (D, H), minval=-lim1, maxval=lim1, dtype=jnp.float32)
        b1 = jax.random.uniform(kb1, (H,), minval=-lim1, maxval=lim1, dtype=jnp.float32)
        lim2 = 1.0 / np.sqrt(H)
        w2 = jax.random.uniform(kw2, (1, H), minval=-lim2, maxval=lim2, dtype=jnp.float32)
        b2 = jax.random.uniform(kb2, (1,), minval=-lim2, maxval=lim2, dtype=jnp.float32)
        return x, (gamma, beta, w1, b1, w2, b2)

    key = jax.random.PRNGKey(0)
    k1, k2 = jax.random.split(key)

    # Config 1: module-sized example (input_dim=32, hidden_dim=32), batch=8 (1 grid step).
    x1, raw1 = make_inputs(k1, 8, 32, 32)
    ref1 = _ref_forward(x1, raw1)

    p1_f32 = prepare_params(*raw1, matmul_dtype=jnp.float32)
    out1 = jax.block_until_ready(metric_predictor(x1, p1_f32))
    assert out1.shape == (8,)
    np.testing.assert_allclose(np.asarray(out1), np.asarray(ref1), rtol=1e-2, atol=1e-2)

    p1_bf16 = prepare_params(*raw1)   # default bf16 MXU feed (all TPU generations)
    out1b = jax.block_until_ready(metric_predictor(x1, p1_bf16))
    np.testing.assert_allclose(np.asarray(out1b), np.asarray(ref1), rtol=5e-2, atol=5e-2)

    # Config 2: multi-step grid (2 tiles), ragged batch, unaligned D/H — no padded copies.
    x2, raw2 = make_inputs(k2, 300, 160, 96)
    ref2 = _ref_forward(x2, raw2)

    p2_f32 = prepare_params(*raw2, matmul_dtype=jnp.float32)
    out2 = jax.block_until_ready(metric_predictor(x2, p2_f32, block_b=256))
    assert out2.shape == (300,)
    np.testing.assert_allclose(np.asarray(out2), np.asarray(ref2), rtol=1e-2, atol=1e-2)

    p2_bf16 = prepare_params(*raw2)
    out2b = jax.block_until_ready(metric_predictor(x2, p2_bf16, block_b=256))
    np.testing.assert_allclose(np.asarray(out2b), np.asarray(ref2), rtol=5e-2, atol=5e-2)

    print("KERNEL_OK")
</pallas_src>

<mosaic_0001>
module attributes {stable_mosaic.version = 11 : i64} {
  func.func @metric_predictor_kernel(%arg0: i32, %arg1: memref<8x32xf32, #tpu.memory_space<vmem>>, %arg2: memref<1x32xf32, #tpu.memory_space<vmem>>, %arg3: memref<1x32xf32, #tpu.memory_space<vmem>>, %arg4: memref<32x32xf32, #tpu.memory_space<vmem>>, %arg5: memref<1x32xf32, #tpu.memory_space<vmem>>, %arg6: memref<1x32xf32, #tpu.memory_space<vmem>>, %arg7: memref<1x1xf32, #tpu.memory_space<smem>>, %arg8: memref<1x8xf32, #tpu.memory_space<vmem>>) attributes {dimension_semantics = [#tpu.dimension_semantics<parallel>], iteration_bounds = array<i64: 1>, scalar_prefetch = 0 : i64, scratch_operands = 0 : i64, tpu.core_type = #tpu.core_type<tc>, window_params = [{transform_indices = @transform_0, window_bounds = array<i64: 8, 32>}, {pipeline_mode = #tpu.pipeline_mode<synchronous>, transform_indices = @transform_1, window_bounds = array<i64: 1, 32>}, {pipeline_mode = #tpu.pipeline_mode<synchronous>, transform_indices = @transform_2, window_bounds = array<i64: 1, 32>}, {pipeline_mode = #tpu.pipeline_mode<synchronous>, transform_indices = @transform_3, window_bounds = array<i64: 32, 32>}, {pipeline_mode = #tpu.pipeline_mode<synchronous>, transform_indices = @transform_4, window_bounds = array<i64: 1, 32>}, {pipeline_mode = #tpu.pipeline_mode<synchronous>, transform_indices = @transform_5, window_bounds = array<i64: 1, 32>}, {transform_indices = @transform_6, window_bounds = array<i64: 1, 1>}, {transform_indices = @transform_7, window_bounds = array<i64: 1, 8>}]} {
    %c0 = arith.constant 0 : index
    %c0_0 = arith.constant 0 : index
    %0 = vector.load %arg1[%c0, %c0_0] : memref<8x32xf32, #tpu.memory_space<vmem>>, vector<8x32xf32>
    %cst = arith.constant dense<0.000000e+00> : vector<8xf32>
    %1 = vector.multi_reduction <add>, %0, %cst [1] : vector<8x32xf32> to vector<8xf32>
    %2 = vector.shape_cast %1 : vector<8xf32> to vector<8x1xf32>
    %cst_1 = arith.constant 3.200000e+01 : f32
    %3 = vector.broadcast %cst_1 : f32 to vector<8x1xf32>
    %4 = arith.divf %2, %3 : vector<8x1xf32>
    %5 = vector.broadcast %4 : vector<8x1xf32> to vector<8x32xf32>
    %6 = arith.subf %0, %5 : vector<8x32xf32>
    %7 = arith.mulf %6, %6 : vector<8x32xf32>
    %cst_2 = arith.constant dense<0.000000e+00> : vector<8xf32>
    %8 = vector.multi_reduction <add>, %7, %cst_2 [1] : vector<8x32xf32> to vector<8xf32>
    %9 = vector.shape_cast %8 : vector<8xf32> to vector<8x1xf32>
    %cst_3 = arith.constant 3.200000e+01 : f32
    %10 = vector.broadcast %cst_3 : f32 to vector<8x1xf32>
    %11 = arith.divf %9, %10 : vector<8x1xf32>
    %cst_4 = arith.constant 9.99999974E-6 : f32
    %12 = vector.broadcast %cst_4 : f32 to vector<8x1xf32>
    %13 = arith.addf %11, %12 : vector<8x1xf32>
    %14 = math.rsqrt %13 : vector<8x1xf32>
    %15 = vector.broadcast %14 : vector<8x1xf32> to vector<8x32xf32>
    %16 = arith.mulf %6, %15 : vector<8x32xf32>
    %c0_5 = arith.constant 0 : index
    %c0_6 = arith.constant 0 : index
    %17 = vector.load %arg2[%c0_5, %c0_6] : memref<1x32xf32, #tpu.memory_space<vmem>>, vector<1x32xf32>
    %18 = vector.broadcast %17 : vector<1x32xf32> to vector<8x32xf32>
    %19 = arith.mulf %16, %18 : vector<8x32xf32>
    %c0_7 = arith.constant 0 : index
    %c0_8 = arith.constant 0 : index
    %20 = vector.load %arg3[%c0_7, %c0_8] : memref<1x32xf32, #tpu.memory_space<vmem>>, vector<1x32xf32>
    %21 = vector.broadcast %20 : vector<1x32xf32> to vector<8x32xf32>
    %22 = arith.addf %19, %21 : vector<8x32xf32>
    %c0_9 = arith.constant 0 : index
    %c0_10 = arith.constant 0 : index
    %23 = vector.load %arg4[%c0_9, %c0_10] : memref<32x32xf32, #tpu.memory_space<vmem>>, vector<32x32xf32>
    %cst_11 = arith.constant dense<0.000000e+00> : vector<8x32xf32>
    %24 = tpu.matmul %22, %23, %cst_11 {dimension_numbers = #tpu.dot_dimension_numbers<[1], [0], [0], [1], [0, 0, 1, 1], [], []>} : vector<8x32xf32>, vector<32x32xf32>, vector<8x32xf32> -> vector<8x32xf32>
    %c0_12 = arith.constant 0 : index
    %c0_13 = arith.constant 0 : index
    %25 = vector.load %arg5[%c0_12, %c0_13] : memref<1x32xf32, #tpu.memory_space<vmem>>, vector<1x32xf32>
    %26 = vector.broadcast %25 : vector<1x32xf32> to vector<8x32xf32>
    %27 = arith.addf %24, %26 : vector<8x32xf32>
    %cst_14 = arith.constant 0.000000e+00 : f32
    %28 = vector.broadcast %cst_14 : f32 to vector<8x32xf32>
    %29 = arith.maximumf %27, %28 : vector<8x32xf32>
    %c0_15 = arith.constant 0 : index
    %c0_16 = arith.constant 0 : index
    %30 = vector.load %arg6[%c0_15, %c0_16] : memref<1x32xf32, #tpu.memory_space<vmem>>, vector<1x32xf32>
    %cst_17 = arith.constant dense<0.000000e+00> : vector<1x8xf32>
    %31 = tpu.matmul %30, %29, %cst_17 {dimension_numbers = #tpu.dot_dimension_numbers<[1], [1], [0], [0], [0, 0, 1, 0], [], []>} : vector<1x32xf32>, vector<8x32xf32>, vector<1x8xf32> -> vector<1x8xf32>
    %c0_18 = arith.constant 0 : index
    %c0_19 = arith.constant 0 : index
    %32 = memref.load %arg7[%c0_18, %c0_19] : memref<1x1xf32, #tpu.memory_space<smem>>
    %33 = vector.broadcast %32 : f32 to vector<1x8xf32>
    %34 = arith.addf %31, %33 : vector<1x8xf32>
    %cst_20 = arith.constant 0.000000e+00 : f32
    %35 = vector.broadcast %cst_20 : f32 to vector<1x8xf32>
    %36 = arith.subf %35, %34 : vector<1x8xf32>
    %37 = math.exp %36 : vector<1x8xf32>
    %cst_21 = arith.constant 1.000000e+00 : f32
    %38 = vector.broadcast %cst_21 : f32 to vector<1x8xf32>
    %39 = arith.addf %38, %37 : vector<1x8xf32>
    %40 = tpu.reciprocal %39 {approx = true} : vector<1x8xf32> -> vector<1x8xf32>
    %c0_22 = arith.constant 0 : index
    %c0_23 = arith.constant 0 : index
    %41 = vector.load %arg8[%c0_22, %c0_23] : memref<1x8xf32, #tpu.memory_space<vmem>>, vector<1x8xf32>
    tpu.vector_store %arg8[%c0_22, %c0_23], %40 {strides = array<i32>} : memref<1x8xf32, #tpu.memory_space<vmem>>, vector<1x8xf32>,
    return
  }
  func.func @transform_0(%arg0: i32) -> (i32, i32) {
    %c0_i32 = arith.constant 0 : i32
    %c0_i32_0 = arith.constant 0 : i32
    return %arg0, %c0_i32 : i32, i32
  }
  func.func @transform_1(%arg0: i32) -> (i32, i32) {
    %c0_i32 = arith.constant 0 : i32
    %c0_i32_0 = arith.constant 0 : i32
    %c0_i32_1 = arith.constant 0 : i32
    return %c0_i32, %c0_i32_0 : i32, i32
  }
  func.func @transform_2(%arg0: i32) -> (i32, i32) {
    %c0_i32 = arith.constant 0 : i32
    %c0_i32_0 = arith.constant 0 : i32
    %c0_i32_1 = arith.constant 0 : i32
    return %c0_i32, %c0_i32_0 : i32, i32
  }
  func.func @transform_3(%arg0: i32) -> (i32, i32) {
    %c0_i32 = arith.constant 0 : i32
    %c0_i32_0 = arith.constant 0 : i32
    %c0_i32_1 = arith.constant 0 : i32
    return %c0_i32, %c0_i32_0 : i32, i32
  }
  func.func @transform_4(%arg0: i32) -> (i32, i32) {
    %c0_i32 = arith.constant 0 : i32
    %c0_i32_0 = arith.constant 0 : i32
    %c0_i32_1 = arith.constant 0 : i32
    return %c0_i32, %c0_i32_0 : i32, i32
  }
  func.func @transform_5(%arg0: i32) -> (i32, i32) {
    %c0_i32 = arith.constant 0 : i32
    %c0_i32_0 = arith.constant 0 : i32
    %c0_i32_1 = arith.constant 0 : i32
    return %c0_i32, %c0_i32_0 : i32, i32
  }
  func.func @transform_6(%arg0: i32) -> (i32, i32) {
    %c0_i32 = arith.constant 0 : i32
    %c0_i32_0 = arith.constant 0 : i32
    %c0_i32_1 = arith.constant 0 : i32
    return %c0_i32, %c0_i32_0 : i32, i32
  }
  func.func @transform_7(%arg0: i32) -> (i32, i32) {
    %c0_i32 = arith.constant 0 : i32
    %c0_i32_0 = arith.constant 0 : i32
    return %c0_i32, %arg0 : i32, i32
  }
}

module attributes {stable_mosaic.version = 11 : i64} {
  func.func @metric_predictor_kernel(%arg0: i32, %arg1: memref<8x32xf32, #tpu.memory_space<vmem>>, %arg2: memref<1x32xf32, #tpu.memory_space<vmem>>, %arg3: memref<1x32xf32, #tpu.memory_space<vmem>>, %arg4: memref<32x32xf32, #tpu.memory_space<vmem>>, %arg5: memref<1x32xf32, #tpu.memory_space<vmem>>, %arg6: memref<1x32xf32, #tpu.memory_space<vmem>>, %arg7: memref<1x1xf32, #tpu.memory_space<smem>>, %arg8: memref<1x8xf32, #tpu.memory_space<vmem>>) attributes {dimension_semantics = [#tpu.dimension_semantics<parallel>], iteration_bounds = array<i64: 1>, scalar_prefetch = 0 : i64, scratch_operands = 0 : i64, tpu.core_type = #tpu.core_type<tc>, window_params = [{transform_indices = @transform_0, window_bounds = array<i64: 8, 32>}, {pipeline_mode = #tpu.pipeline_mode<synchronous>, transform_indices = @transform_1, window_bounds = array<i64: 1, 32>}, {pipeline_mode = #tpu.pipeline_mode<synchronous>, transform_indices = @transform_2, window_bounds = array<i64: 1, 32>}, {pipeline_mode = #tpu.pipeline_mode<synchronous>, transform_indices = @transform_3, window_bounds = array<i64: 32, 32>}, {pipeline_mode = #tpu.pipeline_mode<synchronous>, transform_indices = @transform_4, window_bounds = array<i64: 1, 32>}, {pipeline_mode = #tpu.pipeline_mode<synchronous>, transform_indices = @transform_5, window_bounds = array<i64: 1, 32>}, {transform_indices = @transform_6, window_bounds = array<i64: 1, 1>}, {transform_indices = @transform_7, window_bounds = array<i64: 1, 8>}]} {
    %c0 = arith.constant 0 : index
    %c0_0 = arith.constant 0 : index
    %0 = vector.load %arg1[%c0, %c0_0] : memref<8x32xf32, #tpu.memory_space<vmem>>, vector<8x32xf32>
    %cst = arith.constant dense<0.000000e+00> : vector<8xf32>
    %1 = vector.multi_reduction <add>, %0, %cst [1] : vector<8x32xf32> to vector<8xf32>
    %2 = vector.shape_cast %1 : vector<8xf32> to vector<8x1xf32>
    %cst_1 = arith.constant 3.200000e+01 : f32
    %3 = vector.broadcast %cst_1 : f32 to vector<8x1xf32>
    %4 = arith.divf %2, %3 : vector<8x1xf32>
    %5 = vector.broadcast %4 : vector<8x1xf32> to vector<8x32xf32>
    %6 = arith.subf %0, %5 : vector<8x32xf32>
    %7 = arith.mulf %6, %6 : vector<8x32xf32>
    %cst_2 = arith.constant dense<0.000000e+00> : vector<8xf32>
    %8 = vector.multi_reduction <add>, %7, %cst_2 [1] : vector<8x32xf32> to vector<8xf32>
    %9 = vector.shape_cast %8 : vector<8xf32> to vector<8x1xf32>
    %cst_3 = arith.constant 3.200000e+01 : f32
    %10 = vector.broadcast %cst_3 : f32 to vector<8x1xf32>
    %11 = arith.divf %9, %10 : vector<8x1xf32>
    %cst_4 = arith.constant 9.99999974E-6 : f32
    %12 = vector.broadcast %cst_4 : f32 to vector<8x1xf32>
    %13 = arith.addf %11, %12 : vector<8x1xf32>
    %14 = math.rsqrt %13 : vector<8x1xf32>
    %15 = vector.broadcast %14 : vector<8x1xf32> to vector<8x32xf32>
    %16 = arith.mulf %6, %15 : vector<8x32xf32>
    %c0_5 = arith.constant 0 : index
    %c0_6 = arith.constant 0 : index
    %17 = vector.load %arg2[%c0_5, %c0_6] : memref<1x32xf32, #tpu.memory_space<vmem>>, vector<1x32xf32>
    %18 = vector.broadcast %17 : vector<1x32xf32> to vector<8x32xf32>
    %19 = arith.mulf %16, %18 : vector<8x32xf32>
    %c0_7 = arith.constant 0 : index
    %c0_8 = arith.constant 0 : index
    %20 = vector.load %arg3[%c0_7, %c0_8] : memref<1x32xf32, #tpu.memory_space<vmem>>, vector<1x32xf32>
    %21 = vector.broadcast %20 : vector<1x32xf32> to vector<8x32xf32>
    %22 = arith.addf %19, %21 : vector<8x32xf32>
    %c0_9 = arith.constant 0 : index
    %c0_10 = arith.constant 0 : index
    %23 = vector.load %arg4[%c0_9, %c0_10] : memref<32x32xf32, #tpu.memory_space<vmem>>, vector<32x32xf32>
    %cst_11 = arith.constant dense<0.000000e+00> : vector<8x32xf32>
    %24 = tpu.matmul %22, %23, %cst_11 {dimension_numbers = #tpu.dot_dimension_numbers<[1], [0], [0], [1], [0, 0, 1, 1], [], []>} : vector<8x32xf32>, vector<32x32xf32>, vector<8x32xf32> -> vector<8x32xf32>
    %c0_12 = arith.constant 0 : index
    %c0_13 = arith.constant 0 : index
    %25 = vector.load %arg5[%c0_12, %c0_13] : memref<1x32xf32, #tpu.memory_space<vmem>>, vector<1x32xf32>
    %26 = vector.broadcast %25 : vector<1x32xf32> to vector<8x32xf32>
    %27 = arith.addf %24, %26 : vector<8x32xf32>
    %cst_14 = arith.constant 0.000000e+00 : f32
    %28 = vector.broadcast %cst_14 : f32 to vector<8x32xf32>
    %29 = arith.maximumf %27, %28 : vector<8x32xf32>
    %c0_15 = arith.constant 0 : index
    %c0_16 = arith.constant 0 : index
    %30 = vector.load %arg6[%c0_15, %c0_16] : memref<1x32xf32, #tpu.memory_space<vmem>>, vector<1x32xf32>
    %cst_17 = arith.constant dense<0.000000e+00> : vector<1x8xf32>
    %31 = tpu.matmul %30, %29, %cst_17 {dimension_numbers = #tpu.dot_dimension_numbers<[1], [1], [0], [0], [0, 0, 1, 0], [], []>} : vector<1x32xf32>, vector<8x32xf32>, vector<1x8xf32> -> vector<1x8xf32>
    %c0_18 = arith.constant 0 : index
    %c0_19 = arith.constant 0 : index
    %32 = memref.load %arg7[%c0_18, %c0_19] : memref<1x1xf32, #tpu.memory_space<smem>>
    %33 = vector.broadcast %32 : f32 to vector<1x8xf32>
    %34 = arith.addf %31, %33 : vector<1x8xf32>
    %cst_20 = arith.constant 0.000000e+00 : f32
    %35 = vector.broadcast %cst_20 : f32 to vector<1x8xf32>
    %36 = arith.subf %35, %34 : vector<1x8xf32>
    %37 = math.exp %36 : vector<1x8xf32>
    %cst_21 = arith.constant 1.000000e+00 : f32
    %38 = vector.broadcast %cst_21 : f32 to vector<1x8xf32>
    %39 = arith.addf %38, %37 : vector<1x8xf32>
    %40 = tpu.reciprocal %39 {approx = true} : vector<1x8xf32> -> vector<1x8xf32>
    %c0_22 = arith.constant 0 : index
    %c0_23 = arith.constant 0 : index
    %41 = vector.load %arg8[%c0_22, %c0_23] : memref<1x8xf32, #tpu.memory_space<vmem>>, vector<1x8xf32>
    tpu.vector_store %arg8[%c0_22, %c0_23], %40 {strides = array<i32>} : memref<1x8xf32, #tpu.memory_space<vmem>>, vector<1x8xf32>,
    return
  }
  func.func @transform_0(%arg0: i32) -> (i32, i32) {
    %c0_i32 = arith.constant 0 : i32
    %c0_i32_0 = arith.constant 0 : i32
    return %arg0, %c0_i32 : i32, i32
  }
  func.func @transform_1(%arg0: i32) -> (i32, i32) {
    %c0_i32 = arith.constant 0 : i32
    %c0_i32_0 = arith.constant 0 : i32
    %c0_i32_1 = arith.constant 0 : i32
    return %c0_i32, %c0_i32_0 : i32, i32
  }
  func.func @transform_2(%arg0: i32) -> (i32, i32) {
    %c0_i32 = arith.constant 0 : i32
    %c0_i32_0 = arith.constant 0 : i32
    %c0_i32_1 = arith.constant 0 : i32
    return %c0_i32, %c0_i32_0 : i32, i32
  }
  func.func @transform_3(%arg0: i32) -> (i32, i32) {
    %c0_i32 = arith.constant 0 : i32
    %c0_i32_0 = arith.constant 0 : i32
    %c0_i32_1 = arith.constant 0 : i32
    return %c0_i32, %c0_i32_0 : i32, i32
  }
  func.func @transform_4(%arg0: i32) -> (i32, i32) {
    %c0_i32 = arith.constant 0 : i32
    %c0_i32_0 = arith.constant 0 : i32
    %c0_i32_1 = arith.constant 0 : i32
    return %c0_i32, %c0_i32_0 : i32, i32
  }
  func.func @transform_5(%arg0: i32) -> (i32, i32) {
    %c0_i32 = arith.constant 0 : i32
    %c0_i32_0 = arith.constant 0 : i32
    %c0_i32_1 = arith.constant 0 : i32
    return %c0_i32, %c0_i32_0 : i32, i32
  }
  func.func @transform_6(%arg0: i32) -> (i32, i32) {
    %c0_i32 = arith.constant 0 : i32
    %c0_i32_0 = arith.constant 0 : i32
    %c0_i32_1 = arith.constant 0 : i32
    return %c0_i32, %c0_i32_0 : i32, i32
  }
  func.func @transform_7(%arg0: i32) -> (i32, i32) {
    %c0_i32 = arith.constant 0 : i32
    %c0_i32_0 = arith.constant 0 : i32
    return %c0_i32, %arg0 : i32, i32
  }
}

</mosaic_0001>

<llo_original>
// kernel: tpu_custom_call.1
$region0: #{tpu_custom_call.1}
  #allocation0 [shape = 'u32[]', space=smem, size = 0x4, offset = 0x4, fixed_abs, tag = 'smem constant byte address 0x4 - core index']
  #allocation1 [shape = 'u32[144,128]{1,0:T(1,128)}', space=vmem, size = 0x12000, scoped, tag = 'internal scratch']
  #allocation2 [shape = 'f32[1,1]{1,0:T(1,128)S(6)}', space=smem, size = 0x200, scoped, tag = 'scoped memory for tpu_custom_call.1']
  %s0 = inlined_call_operand.hbm [shape: f32[8,32], index: 0, kind: input, shape index: {}]
  %s1 = inlined_call_operand.vmem [shape: f32[1,32], index: 1, kind: input, shape index: {}]
  %s2 = inlined_call_operand.vmem [shape: f32[1,32], index: 2, kind: input, shape index: {}]
  %s3 = inlined_call_operand.hbm [shape: f32[32,32], index: 3, kind: input, shape index: {}]
  %s4 = inlined_call_operand.vmem [shape: f32[1,32], index: 4, kind: input, shape index: {}]
  %s5 = inlined_call_operand.vmem [shape: f32[1,32], index: 5, kind: input, shape index: {}]
  %s6 = inlined_call_operand.<no memory space> [shape: f32[1,1], index: 6, kind: input, shape index: {}]
  %s7 = inlined_call_operand.hbm [shape: f32[1,8], index: 7, kind: output, shape index: {}]
  %s8 = sld [smem:[#allocation0]]
  $region46: #{tpu_custom_call.1} parent=0
    _
  %s10 = ssub.s32 1, %s8
  %s11 = scalar_select 0, %s10, %s8
  %12 = sst [smem:[#allocation2]] %s6
  $region1: #{tpu_custom_call.1} parent=0
    #allocation3 [shape = 'u8[4096]{0}', space=vmem, size = 0x1000, scoped, tag = 'input window, operand 0, single buffered']
    #allocation4 [shape = 's32[1]{0}', space=sflag, size = 0x4, scoped, tag = 'scoped memory for tpu_custom_call.1']
    #allocation5 [shape = 's32[1]{0}', space=sflag, size = 0x4, scoped, tag = 'scoped memory for tpu_custom_call.1']
    #allocation6 [shape = 'u8[16384]{0}', space=vmem, size = 0x4000, scoped, tag = 'input window, operand 3, single buffered']
    #allocation7 [shape = 's32[1]{0}', space=sflag, size = 0x4, scoped, tag = 'scoped memory for tpu_custom_call.1']
    #allocation8 [shape = 'u8[512]{0}', space=vmem, size = 0x400, scoped, tag = 'output window, operand 0, single buffered']
    %13 = vsyncpa [#allocation4], 0
    %14 = vsyncpa [#allocation7], 0
    %15 = vsyncpa [#allocation5], 0
    // Predicated region
    $region2: #{tpu_custom_call.1} parent=1 // pred_check
      _
    $region3: #{tpu_custom_call.1} parent=1 // pred_check_branch
      %17 = sbr.rel (0) target = $region5
    $region4: #{tpu_custom_call.1} parent=1 // pred_region
      %s19 = ssub.s32 128, 128
      %20 = vsyncadd [#allocation4], %s19
      %s22 = sshll.u32 [#allocation3], 4
      %s23 = int_to_ptr.vmem [resolvable:$true] %s22
      %25 = dma.hbm_to_vmem [thread:$0]  %s0, 128, %s23, [#allocation4]
    $region5: #{tpu_custom_call.1} parent=1 // pred_fallthru
      _
    // Predicated region
    $region6: #{tpu_custom_call.1} parent=1 // pred_check
      _
    $region7: #{tpu_custom_call.1} parent=1 // pred_check_branch
      %27 = sbr.rel (0) target = $region9
    $region8: #{tpu_custom_call.1} parent=1 // pred_region
      _
    $region9: #{tpu_custom_call.1} parent=1 // pred_fallthru
      _
    // Predicated region
    $region10: #{tpu_custom_call.1} parent=1 // pred_check
      _
    $region11: #{tpu_custom_call.1} parent=1 // pred_check_branch
      %29 = sbr.rel (0) target = $region13
    $region12: #{tpu_custom_call.1} parent=1 // pred_region
      _
    $region13: #{tpu_custom_call.1} parent=1 // pred_fallthru
      _
    // Predicated region
    $region14: #{tpu_custom_call.1} parent=1 // pred_check
      _
    $region15: #{tpu_custom_call.1} parent=1 // pred_check_branch
      %31 = sbr.rel (0) target = $region17
    $region16: #{tpu_custom_call.1} parent=1 // pred_region
      %s33 = ssub.s32 512, 512
      %34 = vsyncadd [#allocation7], %s33
      %s35 = sshll.u32 [#allocation6], 4
      %s36 = int_to_ptr.vmem [resolvable:$true] %s35
      %41 = dma.hbm_to_vmem [thread:$0]  %s3, 512, %s36, [#allocation7], 128, 128, 8
    $region17: #{tpu_custom_call.1} parent=1 // pred_fallthru
      _
    // Predicated region
    $region18: #{tpu_custom_call.1} parent=1 // pred_check
      _
    $region19: #{tpu_custom_call.1} parent=1 // pred_check_branch
      %43 = sbr.rel (0) target = $region21
    $region20: #{tpu_custom_call.1} parent=1 // pred_region
      _
    $region21: #{tpu_custom_call.1} parent=1 // pred_fallthru
      _
    // Predicated region
    $region22: #{tpu_custom_call.1} parent=1 // pred_check
      _
    $region23: #{tpu_custom_call.1} parent=1 // pred_check_branch
      %45 = sbr.rel (0) target = $region25
    $region24: #{tpu_custom_call.1} parent=1 // pred_region
      _
    $region25: #{tpu_custom_call.1} parent=1 // pred_fallthru
      _
    // Predicated region
    $region26: #{tpu_custom_call.1} parent=1 // pred_check
      _
    $region27: #{tpu_custom_call.1} parent=1 // pred_check_branch
      %47 = sbr.rel (0) target = $region29
    $region28: #{tpu_custom_call.1} parent=1 // pred_region
      _
    $region29: #{tpu_custom_call.1} parent=1 // pred_fallthru
      _
    // Predicated region
    $region30: #{tpu_custom_call.1} parent=1 // pred_check
      _
    $region31: #{tpu_custom_call.1} parent=1 // pred_check_branch
      %49 = sbr.rel (0) target = $region33
    $region32: #{tpu_custom_call.1} parent=1 // pred_region
      %50 = dma.done [#allocation4], 128
    $region33: #{tpu_custom_call.1} parent=1 // pred_fallthru
      _
    // Predicated region
    $region34: #{tpu_custom_call.1} parent=1 // pred_check
      _
    $region35: #{tpu_custom_call.1} parent=1 // pred_check_branch
      %52 = sbr.rel (0) target = $region37
    $region36: #{tpu_custom_call.1} parent=1 // pred_region
      %53 = dma.done [#allocation7], 512
    $region37: #{tpu_custom_call.1} parent=1 // pred_fallthru
      _
    %v54 = vld [vmem:[#allocation3] sm:$0xff]
    %vm55 = vcmask 261120
    %v56 = vsel %vm55, %v54, 0.0
    %57 = vadd.xlane.f32.xlu0 %v56
    %v58 = vpop.xlane.xlu0 %57
    %v59 = vrcp.pop 32.0
    %v60 = vmul.f32 %v58, %v59
    %v61 = vsub.f32 %v54, %v60
    %v62 = vmul.f32 %v61, %v61
    %v63 = vsel %vm55, %v62, 0.0
    %64 = vadd.xlane.f32.xlu0 %v63
    %v65 = vpop.xlane.xlu0 %64
    %v66 = vmul.f32 %v65, %v59
    %v67 = vadd.f32 %v66, 1e-05
    %v68 = vrsqrt.pop %v67
    %v69 = vmul.f32 %v61, %v68
    %v70 = vld [vmem:[%s1] sm:$0x1]
    %v72 = vlaneseq
    %v73 = vshrl.u32 %v72, 7
    %v74 = vsub.s32 0, %v73
    %v75 = vrot.slane %v70, %v74
    %v77 = vmul.f32 %v69, %v75
    %v78 = vld [vmem:[%s2] sm:$0x1]
    %v80 = vlaneseq
    %v81 = vshrl.u32 %v80, 7
    %v82 = vsub.s32 0, %v81
    %v83 = vrot.slane %v78, %v82
    %v85 = vadd.f32 %v77, %v83
    %v86 = vld [vmem:[#allocation6] sm:$0xff]
    %v87 = vld [vmem:[#allocation6 + $0x8] sm:$0xff]
    %v88 = vld [vmem:[#allocation6 + $0x10] sm:$0xff]
    %v89 = vld [vmem:[#allocation6 + $0x18] sm:$0xff]
    %v90 = vld [vmem:[%s4] sm:$0x1]
    %v92 = vlaneseq
    %v93 = vshrl.u32 %v92, 7
    %v94 = vsub.s32 0, %v93
    %v95 = vrot.slane %v90, %v94
    %v98 = vsel %vm55, %v85, 0
    %100 = vmatprep.subr.mxu0 0.0
    %101 = vmatpush1.msra.mxu0 0.0
    %102 = vmatprep.subr.mxu0 0.0
    %103 = vmatpush1.msra.mxu0 0.0
    %104 = vmatprep.subr.mxu0 0.0
    %105 = vmatpush1.msra.mxu0 0.0
    %106 = vmatprep.subr.mxu0 0.0
    %107 = vmatpush1.msra.mxu0 0.0
    %108 = vmatprep.subr.mxu0 0.0
    %109 = vmatpush1.msra.mxu0 0.0
    %110 = vmatprep.subr.mxu0 0.0
    %111 = vmatpush1.msra.mxu0 0.0
    %112 = vmatprep.subr.mxu0 0.0
    %113 = vmatpush1.msra.mxu0 0.0
    %114 = vmatprep.subr.mxu0 0.0
    %115 = vmatpush1.msra.mxu0 0.0
    %116 = vmatprep.subr.mxu0 0.0
    %117 = vmatpush1.msra.mxu0 0.0
    %118 = vmatprep.subr.mxu0 0.0
    %119 = vmatpush1.msra.mxu0 0.0
    %120 = vmatprep.subr.mxu0 0.0
    %121 = vmatpush1.msra.mxu0 0.0
    %122 = vmatprep.subr.mxu0 0.0
    %123 = vmatpush1.msra.mxu0 0.0
    %124 = vmatprep.subr.mxu0 0.0
    %125 = vmatpush1.msra.mxu0 %v89
    %126 = vmatprep.subr.mxu0 0.0
    %127 = vmatpush1.msra.mxu0 %v88
    %128 = vmatprep.subr.mxu0 0.0
    %129 = vmatpush1.msra.mxu0 %v87
    %130 = vmatprep.subr.mxu0 0.0
    %131 = vmatpush1.msra.mxu0 %v86
    %132 = vmatprep.subr.mxu0 0.0
    %133 = vmatpush2.msra.mxu0 0.0
    %134 = vmatprep.subr.mxu0 0.0
    %135 = vmatpush2.msra.mxu0 0.0
    %136 = vmatprep.subr.mxu0 0.0
    %137 = vmatpush2.msra.mxu0 0.0
    %138 = vmatprep.subr.mxu0 0.0
    %139 = vmatpush2.msra.mxu0 0.0
    %140 = vmatprep.subr.mxu0 0.0
    %141 = vmatpush2.msra.mxu0 0.0
    %142 = vmatprep.subr.mxu0 0.0
    %143 = vmatpush2.msra.mxu0 0.0
    %144 = vmatprep.subr.mxu0 0.0
    %145 = vmatpush2.msra.mxu0 0.0
    %146 = vmatprep.subr.mxu0 0.0
    %147 = vmatpush2.msra.mxu0 0.0
    %148 = vmatprep.subr.mxu0 0.0
    %149 = vmatpush2.msra.mxu0 0.0
    %150 = vmatprep.subr.mxu0 0.0
    %151 = vmatpush2.msra.mxu0 0.0
    %152 = vmatprep.subr.mxu0 0.0
    %153 = vmatpush2.msra.mxu0 0.0
    %154 = vmatprep.subr.mxu0 0.0
    %155 = vmatpush2.msra.mxu0 0.0
    %156 = vmatprep.subr.mxu0 0.0
    %157 = vmatpush2.msra.mxu0 0.0
    %158 = vmatprep.subr.mxu0 0.0
    %159 = vmatpush2.msra.mxu0 0.0
    %160 = vmatprep.subr.mxu0 0.0
    %161 = vmatpush2.msra.mxu0 0.0
    %162 = vmatprep.subr.mxu0 0.0
    %163 = vmatpush2.msra.mxu0 0.0
    %164 = vmatprep.mubr.f32.mxu0 0.0
    %165 = vmatmul.mubr.f32.gmra.mxu0 %v98
    %v166 = vpop.f32.mrf.mxu0
    %v167 = vadd.f32 %v95, %v166
    %v168 = vpop.f32.mrf.mxu0
    %169 = vdwg.mxu0
    %v170 = vmax.f32 %v167, 0.0
    %v171 = vld [vmem:[%s5] sm:$0x1]
    %s172 = sld [smem:[#allocation2]]
    %v173 = vstv %s172
    %v175 = vsel %vm55, %v171, 0
    %v178 = vsel %vm55, %v170, 0
    %180 = vmatprep.subr.mxu0 0.0
    %181 = vmatpush1.xpose.msra.mxu0 0.0
    %182 = vmatprep.subr.mxu0 0.0
    %183 = vmatpush1.xpose.msra.mxu0 0.0
    %184 = vmatprep.subr.mxu0 0.0
    %185 = vmatpush1.xpose.msra.mxu0 0.0
    %186 = vmatprep.subr.mxu0 0.0
    %187 = vmatpush1.xpose.msra.mxu0 0.0
    %188 = vmatprep.subr.mxu0 0.0
    %189 = vmatpush1.xpose.msra.mxu0 0.0
    %190 = vmatprep.subr.mxu0 0.0
    %191 = vmatpush1.xpose.msra.mxu0 0.0
    %192 = vmatprep.subr.mxu0 0.0
    %193 = vmatpush1.xpose.msra.mxu0 0.0
    %194 = vmatprep.subr.mxu0 0.0
    %195 = vmatpush1.xpose.msra.mxu0 0.0
    %196 = vmatprep.subr.mxu0 0.0
    %197 = vmatpush1.xpose.msra.mxu0 0.0
    %198 = vmatprep.subr.mxu0 0.0
    %199 = vmatpush1.xpose.msra.mxu0 0.0
    %200 = vmatprep.subr.mxu0 0.0
    %201 = vmatpush1.xpose.msra.mxu0 0.0
    %202 = vmatprep.subr.mxu0 0.0
    %203 = vmatpush1.xpose.msra.mxu0 0.0
    %204 = vmatprep.subr.mxu0 0.0
    %205 = vmatpush1.xpose.msra.mxu0 0.0
    %206 = vmatprep.subr.mxu0 0.0
    %207 = vmatpush1.xpose.msra.mxu0 0.0
    %208 = vmatprep.subr.mxu0 0.0
    %209 = vmatpush1.xpose.msra.mxu0 0.0
    %210 = vmatprep.subr.mxu0 0.0
    %211 = vmatpush1.xpose.msra.mxu0 %v178
    %212 = vmatprep.subr.mxu0 0.0
    %213 = vmatpush2.xpose.msra.mxu0 0.0
    %214 = vmatprep.subr.mxu0 0.0
    %215 = vmatpush2.xpose.msra.mxu0 0.0
    %216 = vmatprep.subr.mxu0 0.0
    %217 = vmatpush2.xpose.msra.mxu0 0.0
    %218 = vmatprep.subr.mxu0 0.0
    %219 = vmatpush2.xpose.msra.mxu0 0.0
    %220 = vmatprep.subr.mxu0 0.0
    %221 = vmatpush2.xpose.msra.mxu0 0.0
    %222 = vmatprep.subr.mxu0 0.0
    %223 = vmatpush2.xpose.msra.mxu0 0.0
    %224 = vmatprep.subr.mxu0 0.0
    %225 = vmatpush2.xpose.msra.mxu0 0.0
    %226 = vmatprep.subr.mxu0 0.0
    %227 = vmatpush2.xpose.msra.mxu0 0.0
    %228 = vmatprep.subr.mxu0 0.0
    %229 = vmatpush2.xpose.msra.mxu0 0.0
    %230 = vmatprep.subr.mxu0 0.0
    %231 = vmatpush2.xpose.msra.mxu0 0.0
    %232 = vmatprep.subr.mxu0 0.0
    %233 = vmatpush2.xpose.msra.mxu0 0.0
    %234 = vmatprep.subr.mxu0 0.0
    %235 = vmatpush2.xpose.msra.mxu0 0.0
    %236 = vmatprep.subr.mxu0 0.0
    %237 = vmatpush2.xpose.msra.mxu0 0.0
    %238 = vmatprep.subr.mxu0 0.0
    %239 = vmatpush2.xpose.msra.mxu0 0.0
    %240 = vmatprep.subr.mxu0 0.0
    %241 = vmatpush2.xpose.msra.mxu0 0.0
    %242 = vmatprep.subr.mxu0 0.0
    %243 = vmatpush2.xpose.msra.mxu0 0.0
    %244 = vmatprep.mubr.f32.mxu0 0.0
    %245 = vmatmul.mubr.f32.gmra.mxu0 %v175
    %v246 = vpop.f32.mrf.mxu0
    %v247 = vadd.f32 %v173, %v246
    %v248 = vpop.f32.mrf.mxu0
    %249 = vdwg.mxu0
    %v250 = vsub.f32 0.0, %v247
    %v251 = vmul.f32 %v250, 1.442695
    %v252 = vpow.pop %v251
    %v253 = vadd.f32 %v252, 1.0
    %v254 = vrcp.pop %v253
    %vm255 = vcmask 57344
    %256 = vst.msk [vmem:[#allocation8] sm:$0x1] %vm255, %v254
    // Predicated region
    $region38: #{tpu_custom_call.1} parent=1 // pred_check
      _
    $region39: #{tpu_custom_call.1} parent=1 // pred_check_branch
      %258 = sbr.rel (0) target = $region41
    $region40: #{tpu_custom_call.1} parent=1 // pred_region
      %s260 = ssub.s32 16, 16
      %261 = vsyncadd [#allocation5], %s260
      %s263 = sshll.u32 [#allocation8], 4
      %s264 = int_to_ptr.vmem [resolvable:$true] %s263
      %266 = dma.vmem_to_hbm [thread:$0]  %s264, 16, %s7, [#allocation5]
    $region41: #{tpu_custom_call.1} parent=1 // pred_fallthru
      _
    // Predicated region
    $region42: #{tpu_custom_call.1} parent=1 // pred_check
      _
    $region43: #{tpu_custom_call.1} parent=1 // pred_check_branch
      %268 = sbr.rel (0) target = $region45
    $region44: #{tpu_custom_call.1} parent=1 // pred_region
      %269 = dma.done [#allocation5], 16
    $region45: #{tpu_custom_call.1} parent=1 // pred_fallthru
      _
    %270 = vsyncpa [#allocation4], 1
    %271 = vsyncpa [#allocation7], 1
    %272 = vsyncpa [#allocation5], 1

// kernel: tpu_custom_call.1
$region0: #{tpu_custom_call.1}
  #allocation0 [shape = 'u32[]', space=smem, size = 0x4, offset = 0x4, fixed_abs, tag = 'smem constant byte address 0x4 - core index']
  #allocation1 [shape = 'u32[144,128]{1,0:T(1,128)}', space=vmem, size = 0x12000, scoped, tag = 'internal scratch']
  #allocation2 [shape = 'f32[1,1]{1,0:T(1,128)S(6)}', space=smem, size = 0x200, scoped, tag = 'scoped memory for tpu_custom_call.1']
  %s0 = inlined_call_operand.hbm [shape: f32[8,32], index: 0, kind: input, shape index: {}]
  %s1 = inlined_call_operand.vmem [shape: f32[1,32], index: 1, kind: input, shape index: {}]
  %s2 = inlined_call_operand.vmem [shape: f32[1,32], index: 2, kind: input, shape index: {}]
  %s3 = inlined_call_operand.hbm [shape: f32[32,32], index: 3, kind: input, shape index: {}]
  %s4 = inlined_call_operand.vmem [shape: f32[1,32], index: 4, kind: input, shape index: {}]
  %s5 = inlined_call_operand.vmem [shape: f32[1,32], index: 5, kind: input, shape index: {}]
  %s6 = inlined_call_operand.<no memory space> [shape: f32[1,1], index: 6, kind: input, shape index: {}]
  %s7 = inlined_call_operand.hbm [shape: f32[1,8], index: 7, kind: output, shape index: {}]
  %s8 = sld [smem:[#allocation0]]
  $region46: #{tpu_custom_call.1} parent=0
    _
  %s10 = ssub.s32 1, %s8
  %s11 = scalar_select 0, %s10, %s8
  %12 = sst [smem:[#allocation2]] %s6
  $region1: #{tpu_custom_call.1} parent=0
    #allocation3 [shape = 'u8[4096]{0}', space=vmem, size = 0x1000, scoped, tag = 'input window, operand 0, single buffered']
    #allocation4 [shape = 's32[1]{0}', space=sflag, size = 0x4, scoped, tag = 'scoped memory for tpu_custom_call.1']
    #allocation5 [shape = 's32[1]{0}', space=sflag, size = 0x4, scoped, tag = 'scoped memory for tpu_custom_call.1']
    #allocation6 [shape = 'u8[16384]{0}', space=vmem, size = 0x4000, scoped, tag = 'input window, operand 3, single buffered']
    #allocation7 [shape = 's32[1]{0}', space=sflag, size = 0x4, scoped, tag = 'scoped memory for tpu_custom_call.1']
    #allocation8 [shape = 'u8[512]{0}', space=vmem, size = 0x400, scoped, tag = 'output window, operand 0, single buffered']
    %13 = vsyncpa [#allocation4], 0
    %14 = vsyncpa [#allocation7], 0
    %15 = vsyncpa [#allocation5], 0
    // Predicated region
    $region2: #{tpu_custom_call.1} parent=1 // pred_check
      _
    $region3: #{tpu_custom_call.1} parent=1 // pred_check_branch
      %17 = sbr.rel (0) target = $region5
    $region4: #{tpu_custom_call.1} parent=1 // pred_region
      %s19 = ssub.s32 128, 128
      %20 = vsyncadd [#allocation4], %s19
      %s22 = sshll.u32 [#allocation3], 4
      %s23 = int_to_ptr.vmem [resolvable:$true] %s22
      %25 = dma.hbm_to_vmem [thread:$0]  %s0, 128, %s23, [#allocation4]
    $region5: #{tpu_custom_call.1} parent=1 // pred_fallthru
      _
    // Predicated region
    $region6: #{tpu_custom_call.1} parent=1 // pred_check
      _
    $region7: #{tpu_custom_call.1} parent=1 // pred_check_branch
      %27 = sbr.rel (0) target = $region9
    $region8: #{tpu_custom_call.1} parent=1 // pred_region
      _
    $region9: #{tpu_custom_call.1} parent=1 // pred_fallthru
      _
    // Predicated region
    $region10: #{tpu_custom_call.1} parent=1 // pred_check
      _
    $region11: #{tpu_custom_call.1} parent=1 // pred_check_branch
      %29 = sbr.rel (0) target = $region13
    $region12: #{tpu_custom_call.1} parent=1 // pred_region
      _
    $region13: #{tpu_custom_call.1} parent=1 // pred_fallthru
      _
    // Predicated region
    $region14: #{tpu_custom_call.1} parent=1 // pred_check
      _
    $region15: #{tpu_custom_call.1} parent=1 // pred_check_branch
      %31 = sbr.rel (0) target = $region17
    $region16: #{tpu_custom_call.1} parent=1 // pred_region
      %s33 = ssub.s32 512, 512
      %34 = vsyncadd [#allocation7], %s33
      %s35 = sshll.u32 [#allocation6], 4
      %s36 = int_to_ptr.vmem [resolvable:$true] %s35
      %41 = dma.hbm_to_vmem [thread:$0]  %s3, 512, %s36, [#allocation7], 128, 128, 8
    $region17: #{tpu_custom_call.1} parent=1 // pred_fallthru
      _
    // Predicated region
    $region18: #{tpu_custom_call.1} parent=1 // pred_check
      _
    $region19: #{tpu_custom_call.1} parent=1 // pred_check_branch
      %43 = sbr.rel (0) target = $region21
    $region20: #{tpu_custom_call.1} parent=1 // pred_region
      _
    $region21: #{tpu_custom_call.1} parent=1 // pred_fallthru
      _
    // Predicated region
    $region22: #{tpu_custom_call.1} parent=1 // pred_check
      _
    $region23: #{tpu_custom_call.1} parent=1 // pred_check_branch
      %45 = sbr.rel (0) target = $region25
    $region24: #{tpu_custom_call.1} parent=1 // pred_region
      _
    $region25: #{tpu_custom_call.1} parent=1 // pred_fallthru
      _
    // Predicated region
    $region26: #{tpu_custom_call.1} parent=1 // pred_check
      _
    $region27: #{tpu_custom_call.1} parent=1 // pred_check_branch
      %47 = sbr.rel (0) target = $region29
    $region28: #{tpu_custom_call.1} parent=1 // pred_region
      _
    $region29: #{tpu_custom_call.1} parent=1 // pred_fallthru
      _
    // Predicated region
    $region30: #{tpu_custom_call.1} parent=1 // pred_check
      _
    $region31: #{tpu_custom_call.1} parent=1 // pred_check_branch
      %49 = sbr.rel (0) target = $region33
    $region32: #{tpu_custom_call.1} parent=1 // pred_region
      %50 = dma.done [#allocation4], 128
    $region33: #{tpu_custom_call.1} parent=1 // pred_fallthru
      _
    // Predicated region
    $region34: #{tpu_custom_call.1} parent=1 // pred_check
      _
    $region35: #{tpu_custom_call.1} parent=1 // pred_check_branch
      %52 = sbr.rel (0) target = $region37
    $region36: #{tpu_custom_call.1} parent=1 // pred_region
      %53 = dma.done [#allocation7], 512
    $region37: #{tpu_custom_call.1} parent=1 // pred_fallthru
      _
    %v54 = vld [vmem:[#allocation3] sm:$0xff]
    %vm55 = vcmask 261120
    %v56 = vsel %vm55, %v54, 0.0
    %57 = vadd.xlane.f32.xlu0 %v56
    %v58 = vpop.xlane.xlu0 %57
    %v59 = vrcp.pop 32.0
    %v60 = vmul.f32 %v58, %v59
    %v61 = vsub.f32 %v54, %v60
    %v62 = vmul.f32 %v61, %v61
    %v63 = vsel %vm55, %v62, 0.0
    %64 = vadd.xlane.f32.xlu0 %v63
    %v65 = vpop.xlane.xlu0 %64
    %v66 = vmul.f32 %v65, %v59
    %v67 = vadd.f32 %v66, 1e-05
    %v68 = vrsqrt.pop %v67
    %v69 = vmul.f32 %v61, %v68
    %v70 = vld [vmem:[%s1] sm:$0x1]
    %v72 = vlaneseq
    %v73 = vshrl.u32 %v72, 7
    %v74 = vsub.s32 0, %v73
    %v75 = vrot.slane %v70, %v74
    %v77 = vmul.f32 %v69, %v75
    %v78 = vld [vmem:[%s2] sm:$0x1]
    %v80 = vlaneseq
    %v81 = vshrl.u32 %v80, 7
    %v82 = vsub.s32 0, %v81
    %v83 = vrot.slane %v78, %v82
    %v85 = vadd.f32 %v77, %v83
    %v86 = vld [vmem:[#allocation6] sm:$0xff]
    %v87 = vld [vmem:[#allocation6 + $0x8] sm:$0xff]
    %v88 = vld [vmem:[#allocation6 + $0x10] sm:$0xff]
    %v89 = vld [vmem:[#allocation6 + $0x18] sm:$0xff]
    %v90 = vld [vmem:[%s4] sm:$0x1]
    %v92 = vlaneseq
    %v93 = vshrl.u32 %v92, 7
    %v94 = vsub.s32 0, %v93
    %v95 = vrot.slane %v90, %v94
    %v98 = vsel %vm55, %v85, 0
    %100 = vmatprep.subr.mxu0 0.0
    %101 = vmatpush1.msra.mxu0 0.0
    %102 = vmatprep.subr.mxu0 0.0
    %103 = vmatpush1.msra.mxu0 0.0
    %104 = vmatprep.subr.mxu0 0.0
    %105 = vmatpush1.msra.mxu0 0.0
    %106 = vmatprep.subr.mxu0 0.0
    %107 = vmatpush1.msra.mxu0 0.0
    %108 = vmatprep.subr.mxu0 0.0
    %109 = vmatpush1.msra.mxu0 0.0
    %110 = vmatprep.subr.mxu0 0.0
    %111 = vmatpush1.msra.mxu0 0.0
    %112 = vmatprep.subr.mxu0 0.0
    %113 = vmatpush1.msra.mxu0 0.0
    %114 = vmatprep.subr.mxu0 0.0
    %115 = vmatpush1.msra.mxu0 0.0
    %116 = vmatprep.subr.mxu0 0.0
    %117 = vmatpush1.msra.mxu0 0.0
    %118 = vmatprep.subr.mxu0 0.0
    %119 = vmatpush1.msra.mxu0 0.0
    %120 = vmatprep.subr.mxu0 0.0
    %121 = vmatpush1.msra.mxu0 0.0
    %122 = vmatprep.subr.mxu0 0.0
    %123 = vmatpush1.msra.mxu0 0.0
    %124 = vmatprep.subr.mxu0 0.0
    %125 = vmatpush1.msra.mxu0 %v89
    %126 = vmatprep.subr.mxu0 0.0
    %127 = vmatpush1.msra.mxu0 %v88
    %128 = vmatprep.subr.mxu0 0.0
    %129 = vmatpush1.msra.mxu0 %v87
    %130 = vmatprep.subr.mxu0 0.0
    %131 = vmatpush1.msra.mxu0 %v86
    %132 = vmatprep.subr.mxu0 0.0
    %133 = vmatpush2.msra.mxu0 0.0
    %134 = vmatprep.subr.mxu0 0.0
    %135 = vmatpush2.msra.mxu0 0.0
    %136 = vmatprep.subr.mxu0 0.0
    %137 = vmatpush2.msra.mxu0 0.0
    %138 = vmatprep.subr.mxu0 0.0
    %139 = vmatpush2.msra.mxu0 0.0
    %140 = vmatprep.subr.mxu0 0.0
    %141 = vmatpush2.msra.mxu0 0.0
    %142 = vmatprep.subr.mxu0 0.0
    %143 = vmatpush2.msra.mxu0 0.0
    %144 = vmatprep.subr.mxu0 0.0
    %145 = vmatpush2.msra.mxu0 0.0
    %146 = vmatprep.subr.mxu0 0.0
    %147 = vmatpush2.msra.mxu0 0.0
    %148 = vmatprep.subr.mxu0 0.0
    %149 = vmatpush2.msra.mxu0 0.0
    %150 = vmatprep.subr.mxu0 0.0
    %151 = vmatpush2.msra.mxu0 0.0
    %152 = vmatprep.subr.mxu0 0.0
    %153 = vmatpush2.msra.mxu0 0.0
    %154 = vmatprep.subr.mxu0 0.0
    %155 = vmatpush2.msra.mxu0 0.0
    %156 = vmatprep.subr.mxu0 0.0
    %157 = vmatpush2.msra.mxu0 0.0
    %158 = vmatprep.subr.mxu0 0.0
    %159 = vmatpush2.msra.mxu0 0.0
    %160 = vmatprep.subr.mxu0 0.0
    %161 = vmatpush2.msra.mxu0 0.0
    %162 = vmatprep.subr.mxu0 0.0
    %163 = vmatpush2.msra.mxu0 0.0
    %164 = vmatprep.mubr.f32.mxu0 0.0
    %165 = vmatmul.mubr.f32.gmra.mxu0 %v98
    %v166 = vpop.f32.mrf.mxu0
    %v167 = vadd.f32 %v95, %v166
    %v168 = vpop.f32.mrf.mxu0
    %169 = vdwg.mxu0
    %v170 = vmax.f32 %v167, 0.0
    %v171 = vld [vmem:[%s5] sm:$0x1]
    %s172 = sld [smem:[#allocation2]]
    %v173 = vstv %s172
    %v175 = vsel %vm55, %v171, 0
    %v178 = vsel %vm55, %v170, 0
    %180 = vmatprep.subr.mxu0 0.0
    %181 = vmatpush1.xpose.msra.mxu0 0.0
    %182 = vmatprep.subr.mxu0 0.0
    %183 = vmatpush1.xpose.msra.mxu0 0.0
    %184 = vmatprep.subr.mxu0 0.0
    %185 = vmatpush1.xpose.msra.mxu0 0.0
    %186 = vmatprep.subr.mxu0 0.0
    %187 = vmatpush1.xpose.msra.mxu0 0.0
    %188 = vmatprep.subr.mxu0 0.0
    %189 = vmatpush1.xpose.msra.mxu0 0.0
    %190 = vmatprep.subr.mxu0 0.0
    %191 = vmatpush1.xpose.msra.mxu0 0.0
    %192 = vmatprep.subr.mxu0 0.0
    %193 = vmatpush1.xpose.msra.mxu0 0.0
    %194 = vmatprep.subr.mxu0 0.0
    %195 = vmatpush1.xpose.msra.mxu0 0.0
    %196 = vmatprep.subr.mxu0 0.0
    %197 = vmatpush1.xpose.msra.mxu0 0.0
    %198 = vmatprep.subr.mxu0 0.0
    %199 = vmatpush1.xpose.msra.mxu0 0.0
    %200 = vmatprep.subr.mxu0 0.0
    %201 = vmatpush1.xpose.msra.mxu0 0.0
    %202 = vmatprep.subr.mxu0 0.0
    %203 = vmatpush1.xpose.msra.mxu0 0.0
    %204 = vmatprep.subr.mxu0 0.0
    %205 = vmatpush1.xpose.msra.mxu0 0.0
    %206 = vmatprep.subr.mxu0 0.0
    %207 = vmatpush1.xpose.msra.mxu0 0.0
    %208 = vmatprep.subr.mxu0 0.0
    %209 = vmatpush1.xpose.msra.mxu0 0.0
    %210 = vmatprep.subr.mxu0 0.0
    %211 = vmatpush1.xpose.msra.mxu0 %v178
    %212 = vmatprep.subr.mxu0 0.0
    %213 = vmatpush2.xpose.msra.mxu0 0.0
    %214 = vmatprep.subr.mxu0 0.0
    %215 = vmatpush2.xpose.msra.mxu0 0.0
    %216 = vmatprep.subr.mxu0 0.0
    %217 = vmatpush2.xpose.msra.mxu0 0.0
    %218 = vmatprep.subr.mxu0 0.0
    %219 = vmatpush2.xpose.msra.mxu0 0.0
    %220 = vmatprep.subr.mxu0 0.0
    %221 = vmatpush2.xpose.msra.mxu0 0.0
    %222 = vmatprep.subr.mxu0 0.0
    %223 = vmatpush2.xpose.msra.mxu0 0.0
    %224 = vmatprep.subr.mxu0 0.0
    %225 = vmatpush2.xpose.msra.mxu0 0.0
    %226 = vmatprep.subr.mxu0 0.0
    %227 = vmatpush2.xpose.msra.mxu0 0.0
    %228 = vmatprep.subr.mxu0 0.0
    %229 = vmatpush2.xpose.msra.mxu0 0.0
    %230 = vmatprep.subr.mxu0 0.0
    %231 = vmatpush2.xpose.msra.mxu0 0.0
    %232 = vmatprep.subr.mxu0 0.0
    %233 = vmatpush2.xpose.msra.mxu0 0.0
    %234 = vmatprep.subr.mxu0 0.0
    %235 = vmatpush2.xpose.msra.mxu0 0.0
    %236 = vmatprep.subr.mxu0 0.0
    %237 = vmatpush2.xpose.msra.mxu0 0.0
    %238 = vmatprep.subr.mxu0 0.0
    %239 = vmatpush2.xpose.msra.mxu0 0.0
    %240 = vmatprep.subr.mxu0 0.0
    %241 = vmatpush2.xpose.msra.mxu0 0.0
    %242 = vmatprep.subr.mxu0 0.0
    %243 = vmatpush2.xpose.msra.mxu0 0.0
    %244 = vmatprep.mubr.f32.mxu0 0.0
    %245 = vmatmul.mubr.f32.gmra.mxu0 %v175
    %v246 = vpop.f32.mrf.mxu0
    %v247 = vadd.f32 %v173, %v246
    %v248 = vpop.f32.mrf.mxu0
    %249 = vdwg.mxu0
    %v250 = vsub.f32 0.0, %v247
    %v251 = vmul.f32 %v250, 1.442695
    %v252 = vpow.pop %v251
    %v253 = vadd.f32 %v252, 1.0
    %v254 = vrcp.pop %v253
    %vm255 = vcmask 57344
    %256 = vst.msk [vmem:[#allocation8] sm:$0x1] %vm255, %v254
    // Predicated region
    $region38: #{tpu_custom_call.1} parent=1 // pred_check
      _
    $region39: #{tpu_custom_call.1} parent=1 // pred_check_branch
      %258 = sbr.rel (0) target = $region41
    $region40: #{tpu_custom_call.1} parent=1 // pred_region
      %s260 = ssub.s32 16, 16
      %261 = vsyncadd [#allocation5], %s260
      %s263 = sshll.u32 [#allocation8], 4
      %s264 = int_to_ptr.vmem [resolvable:$true] %s263
      %266 = dma.vmem_to_hbm [thread:$0]  %s264, 16, %s7, [#allocation5]
    $region41: #{tpu_custom_call.1} parent=1 // pred_fallthru
      _
    // Predicated region
    $region42: #{tpu_custom_call.1} parent=1 // pred_check
      _
    $region43: #{tpu_custom_call.1} parent=1 // pred_check_branch
      %268 = sbr.rel (0) target = $region45
    $region44: #{tpu_custom_call.1} parent=1 // pred_region
      %269 = dma.done [#allocation5], 16
    $region45: #{tpu_custom_call.1} parent=1 // pred_fallthru
      _
    %270 = vsyncpa [#allocation4], 1
    %271 = vsyncpa [#allocation7], 1
    %272 = vsyncpa [#allocation5], 1

</llo_original>
